<compile_context>
chip_gen: v5e
topology: v5e:2x2
jax: 0.10.0
libtpu: 0.0.40
codegen_flags: <defaults>
</compile_context>

<pallas_src>
import functools

import jax
import jax.numpy as jnp
from jax.experimental import pallas as pl
from jax.experimental.pallas import tpu as pltpu

IN_FEATURES = 28 * 28   # 784
H1, H2, OUT = 50, 30, 10
LANE = 128              # lane-pad hidden/output widths to full vregs


def _round_up(x, m):
    return (x + m - 1) // m * m


def mlp_kernel(x_ref, w1_ref, b1_ref, w2_ref, b2_ref, w3_ref, b3_ref, o_ref):
    # Cast the f32 input tile to bf16 in-kernel (free vs. HBM), MXU matmul with
    # f32 accumulation.
    x_bf = x_ref[...].astype(jnp.bfloat16)
    # fc1 + relu
    h = jnp.dot(x_bf, w1_ref[...], preferred_element_type=jnp.float32)
    h = jnp.maximum(h + b1_ref[...], 0.0)
    # fc2 + relu (padded lanes stay exactly 0 through bias + ReLU)
    h = jnp.dot(h.astype(jnp.bfloat16), w2_ref[...],
                preferred_element_type=jnp.float32)
    h = jnp.maximum(h + b2_ref[...], 0.0)
    # fc3 (no activation)
    h = jnp.dot(h.astype(jnp.bfloat16), w3_ref[...],
                preferred_element_type=jnp.float32)
    o_ref[...] = (h + b3_ref[...]).astype(o_ref.dtype)


def pack_params(raw_params):
    """Zero-pad every width to 128 lanes; weights -> bf16, biases stay f32 rows."""
    w1, b1, w2, b2, w3, b3 = raw_params

    def pad_w(w, rows, cols):
        out = jnp.zeros((rows, cols), jnp.float32)
        out = out.at[: w.shape[0], : w.shape[1]].set(w)
        return out.astype(jnp.bfloat16)

    def pad_b(b, cols):
        return jnp.zeros((1, cols), jnp.float32).at[0, : b.shape[0]].set(b)

    return (
        pad_w(w1, IN_FEATURES, LANE), pad_b(b1, LANE),
        pad_w(w2, LANE, LANE),        pad_b(b2, LANE),
        pad_w(w3, LANE, LANE),        pad_b(b3, LANE),
    )


@functools.partial(jax.jit, static_argnames=("tile_n",))
def custom_mlp_forward(x, packed_params, *, tile_n=1024):
    """x: (N, 1, 28, 28) or (N, 784) float32.  Returns (N, 10) float32."""
    w1, b1, w2, b2, w3, b3 = packed_params

    x2d = x.reshape(-1, IN_FEATURES)          # torch x.view(-1, 784); stays f32
    n = x2d.shape[0]

    # Tile rows must be a multiple of 8 (f32 sublane); partial last block is
    # handled by Pallas, so no explicit padding copy is needed.
    tile = min(tile_n, _round_up(n, 8))
    grid = (pl.cdiv(n, tile),)

    out = pl.pallas_call(
        mlp_kernel,
        out_shape=jax.ShapeDtypeStruct((n, LANE), jnp.float32),
        grid_spec=pltpu.PrefetchScalarGridSpec(
            num_scalar_prefetch=0,
            grid=grid,
            in_specs=[
                # batch tile of x: pipelined (double-buffered) across the grid
                pl.BlockSpec((tile, IN_FEATURES), lambda i: (i, 0)),
                # weights/biases: constant block index -> stay VMEM-resident
                pl.BlockSpec((IN_FEATURES, LANE), lambda i: (0, 0)),  # w1
                pl.BlockSpec((1, LANE),           lambda i: (0, 0)),  # b1
                pl.BlockSpec((LANE, LANE),        lambda i: (0, 0)),  # w2
                pl.BlockSpec((1, LANE),           lambda i: (0, 0)),  # b2
                pl.BlockSpec((LANE, LANE),        lambda i: (0, 0)),  # w3
                pl.BlockSpec((1, LANE),           lambda i: (0, 0)),  # b3
            ],
            out_specs=pl.BlockSpec((tile, LANE), lambda i: (i, 0)),
        ),
        compiler_params=pltpu.CompilerParams(
            dimension_semantics=("parallel",),  # megacore sharding on v7x
        ),
    )(x2d, w1, b1, w2, b2, w3, b3)

    return out[:, :OUT]


def init_params(key):
    """Deterministic init mimicking torch.nn.Linear's U(-1/sqrt(fan_in), ...).

    Weights are stored (in_features, out_features) so the kernel computes x @ W.
    """
    def linear(key, fan_in, fan_out):
        kw, kb = jax.random.split(key)
        bound = 1.0 / jnp.sqrt(fan_in)
        w = jax.random.uniform(kw, (fan_in, fan_out), jnp.float32, -bound, bound)
        b = jax.random.uniform(kb, (fan_out,), jnp.float32, -bound, bound)
        return w, b

    k1, k2, k3 = jax.random.split(key, 3)
    w1, b1 = linear(k1, IN_FEATURES, H1)
    w2, b2 = linear(k2, H1, H2)
    w3, b3 = linear(k3, H2, OUT)
    return (w1, b1, w2, b2, w3, b3)


def reference_forward(x, raw_params):
    """Pure-JAX reference with the SAME bf16 casts the kernel applies."""
    w1, b1, w2, b2, w3, b3 = raw_params
    bf = lambda a: a.astype(jnp.bfloat16)
    x2d = x.reshape(-1, IN_FEATURES)
    h = jnp.dot(bf(x2d), bf(w1), preferred_element_type=jnp.float32) + b1
    h = jnp.maximum(h, 0.0)
    h = jnp.dot(bf(h), bf(w2), preferred_element_type=jnp.float32) + b2
    h = jnp.maximum(h, 0.0)
    h = jnp.dot(bf(h), bf(w3), preferred_element_type=jnp.float32) + b3
    return h


if __name__ == "__main__":
    key = jax.random.PRNGKey(0)
    k_params, k_x = jax.random.split(key)

    raw_params = init_params(k_params)
    packed = pack_params(raw_params)

    # Small MNIST-like batch: N=2, C=1, H=W=28 (forward implies 784 features).
    x = jax.random.normal(k_x, (2, 1, 28, 28), dtype=jnp.float32)

    out = custom_mlp_forward(x, packed)
    out = jax.block_until_ready(out)

    ref = reference_forward(x, raw_params)

    assert out.shape == (2, 10), out.shape
    assert jnp.allclose(out, ref, atol=1e-3, rtol=1e-3), float(
        jnp.max(jnp.abs(out - ref))
    )

    print("KERNEL_OK")
</pallas_src>

<mosaic_0001>
module attributes {stable_mosaic.version = 11 : i64} {
  func.func @mlp_kernel(%arg0: i32, %arg1: memref<8x784xf32, #tpu.memory_space<vmem>>, %arg2: memref<784x128xbf16, #tpu.memory_space<vmem>>, %arg3: memref<1x128xf32, #tpu.memory_space<vmem>>, %arg4: memref<128x128xbf16, #tpu.memory_space<vmem>>, %arg5: memref<1x128xf32, #tpu.memory_space<vmem>>, %arg6: memref<128x128xbf16, #tpu.memory_space<vmem>>, %arg7: memref<1x128xf32, #tpu.memory_space<vmem>>, %arg8: memref<8x128xf32, #tpu.memory_space<vmem>>) attributes {dimension_semantics = [#tpu.dimension_semantics<parallel>], iteration_bounds = array<i64: 1>, scalar_prefetch = 0 : i64, scratch_operands = 0 : i64, tpu.core_type = #tpu.core_type<tc>, window_params = [{transform_indices = @transform_0, window_bounds = array<i64: 8, 784>}, {pipeline_mode = #tpu.pipeline_mode<synchronous>, transform_indices = @transform_1, window_bounds = array<i64: 784, 128>}, {pipeline_mode = #tpu.pipeline_mode<synchronous>, transform_indices = @transform_2, window_bounds = array<i64: 1, 128>}, {pipeline_mode = #tpu.pipeline_mode<synchronous>, transform_indices = @transform_3, window_bounds = array<i64: 128, 128>}, {pipeline_mode = #tpu.pipeline_mode<synchronous>, transform_indices = @transform_4, window_bounds = array<i64: 1, 128>}, {pipeline_mode = #tpu.pipeline_mode<synchronous>, transform_indices = @transform_5, window_bounds = array<i64: 128, 128>}, {pipeline_mode = #tpu.pipeline_mode<synchronous>, transform_indices = @transform_6, window_bounds = array<i64: 1, 128>}, {transform_indices = @transform_7, window_bounds = array<i64: 8, 128>}]} {
    %c0 = arith.constant 0 : index
    %c0_0 = arith.constant 0 : index
    %0 = vector.load %arg1[%c0, %c0_0] : memref<8x784xf32, #tpu.memory_space<vmem>>, vector<8x784xf32>
    %1 = arith.truncf %0 : vector<8x784xf32> to vector<8x784xbf16>
    %c0_1 = arith.constant 0 : index
    %c0_2 = arith.constant 0 : index
    %2 = vector.load %arg2[%c0_1, %c0_2] : memref<784x128xbf16, #tpu.memory_space<vmem>>, vector<784x128xbf16>
    %cst = arith.constant dense<0.000000e+00> : vector<8x128xf32>
    %3 = tpu.matmul %1, %2, %cst {dimension_numbers = #tpu.dot_dimension_numbers<[1], [0], [0], [1], [0, 0, 1, 1], [], []>} : vector<8x784xbf16>, vector<784x128xbf16>, vector<8x128xf32> -> vector<8x128xf32>
    %c0_3 = arith.constant 0 : index
    %c0_4 = arith.constant 0 : index
    %4 = vector.load %arg3[%c0_3, %c0_4] : memref<1x128xf32, #tpu.memory_space<vmem>>, vector<1x128xf32>
    %5 = vector.broadcast %4 : vector<1x128xf32> to vector<8x128xf32>
    %6 = arith.addf %3, %5 : vector<8x128xf32>
    %cst_5 = arith.constant 0.000000e+00 : f32
    %7 = vector.broadcast %cst_5 : f32 to vector<8x128xf32>
    %8 = arith.maximumf %6, %7 : vector<8x128xf32>
    %9 = arith.truncf %8 : vector<8x128xf32> to vector<8x128xbf16>
    %c0_6 = arith.constant 0 : index
    %c0_7 = arith.constant 0 : index
    %10 = vector.load %arg4[%c0_6, %c0_7] : memref<128x128xbf16, #tpu.memory_space<vmem>>, vector<128x128xbf16>
    %cst_8 = arith.constant dense<0.000000e+00> : vector<8x128xf32>
    %11 = tpu.matmul %9, %10, %cst_8 {dimension_numbers = #tpu.dot_dimension_numbers<[1], [0], [0], [1], [0, 0, 1, 1], [], []>} : vector<8x128xbf16>, vector<128x128xbf16>, vector<8x128xf32> -> vector<8x128xf32>
    %c0_9 = arith.constant 0 : index
    %c0_10 = arith.constant 0 : index
    %12 = vector.load %arg5[%c0_9, %c0_10] : memref<1x128xf32, #tpu.memory_space<vmem>>, vector<1x128xf32>
    %13 = vector.broadcast %12 : vector<1x128xf32> to vector<8x128xf32>
    %14 = arith.addf %11, %13 : vector<8x128xf32>
    %cst_11 = arith.constant 0.000000e+00 : f32
    %15 = vector.broadcast %cst_11 : f32 to vector<8x128xf32>
    %16 = arith.maximumf %14, %15 : vector<8x128xf32>
    %17 = arith.truncf %16 : vector<8x128xf32> to vector<8x128xbf16>
    %c0_12 = arith.constant 0 : index
    %c0_13 = arith.constant 0 : index
    %18 = vector.load %arg6[%c0_12, %c0_13] : memref<128x128xbf16, #tpu.memory_space<vmem>>, vector<128x128xbf16>
    %cst_14 = arith.constant dense<0.000000e+00> : vector<8x128xf32>
    %19 = tpu.matmul %17, %18, %cst_14 {dimension_numbers = #tpu.dot_dimension_numbers<[1], [0], [0], [1], [0, 0, 1, 1], [], []>} : vector<8x128xbf16>, vector<128x128xbf16>, vector<8x128xf32> -> vector<8x128xf32>
    %c0_15 = arith.constant 0 : index
    %c0_16 = arith.constant 0 : index
    %20 = vector.load %arg7[%c0_15, %c0_16] : memref<1x128xf32, #tpu.memory_space<vmem>>, vector<1x128xf32>
    %21 = vector.broadcast %20 : vector<1x128xf32> to vector<8x128xf32>
    %22 = arith.addf %19, %21 : vector<8x128xf32>
    %c0_17 = arith.constant 0 : index
    %c0_18 = arith.constant 0 : index
    %23 = vector.load %arg8[%c0_17, %c0_18] : memref<8x128xf32, #tpu.memory_space<vmem>>, vector<8x128xf32>
    tpu.vector_store %arg8[%c0_17, %c0_18], %22 {strides = array<i32>} : memref<8x128xf32, #tpu.memory_space<vmem>>, vector<8x128xf32>,
    return
  }
  func.func @transform_0(%arg0: i32) -> (i32, i32) {
    %c0_i32 = arith.constant 0 : i32
    %c0_i32_0 = arith.constant 0 : i32
    return %arg0, %c0_i32 : i32, i32
  }
  func.func @transform_1(%arg0: i32) -> (i32, i32) {
    %c0_i32 = arith.constant 0 : i32
    %c0_i32_0 = arith.constant 0 : i32
    %c0_i32_1 = arith.constant 0 : i32
    return %c0_i32, %c0_i32_0 : i32, i32
  }
  func.func @transform_2(%arg0: i32) -> (i32, i32) {
    %c0_i32 = arith.constant 0 : i32
    %c0_i32_0 = arith.constant 0 : i32
    %c0_i32_1 = arith.constant 0 : i32
    return %c0_i32, %c0_i32_0 : i32, i32
  }
  func.func @transform_3(%arg0: i32) -> (i32, i32) {
    %c0_i32 = arith.constant 0 : i32
    %c0_i32_0 = arith.constant 0 : i32
    %c0_i32_1 = arith.constant 0 : i32
    return %c0_i32, %c0_i32_0 : i32, i32
  }
  func.func @transform_4(%arg0: i32) -> (i32, i32) {
    %c0_i32 = arith.constant 0 : i32
    %c0_i32_0 = arith.constant 0 : i32
    %c0_i32_1 = arith.constant 0 : i32
    return %c0_i32, %c0_i32_0 : i32, i32
  }
  func.func @transform_5(%arg0: i32) -> (i32, i32) {
    %c0_i32 = arith.constant 0 : i32
    %c0_i32_0 = arith.constant 0 : i32
    %c0_i32_1 = arith.constant 0 : i32
    return %c0_i32, %c0_i32_0 : i32, i32
  }
  func.func @transform_6(%arg0: i32) -> (i32, i32) {
    %c0_i32 = arith.constant 0 : i32
    %c0_i32_0 = arith.constant 0 : i32
    %c0_i32_1 = arith.constant 0 : i32
    return %c0_i32, %c0_i32_0 : i32, i32
  }
  func.func @transform_7(%arg0: i32) -> (i32, i32) {
    %c0_i32 = arith.constant 0 : i32
    %c0_i32_0 = arith.constant 0 : i32
    return %arg0, %c0_i32 : i32, i32
  }
}

</mosaic_0001>

<llo_original>
// kernel: custom_mlp_forward.1
$region0: #{custom_mlp_forward.1}
  #allocation0 [shape = 'u32[]', space=smem, size = 0x4, offset = 0x4, fixed_abs, tag = 'smem constant byte address 0x4 - core index']
  #allocation1 [shape = 'u32[72,128]{1,0:T(1,128)}', space=vmem, size = 0x9000, scoped, tag = 'internal scratch']
  %s0 = inlined_call_operand.vmem [shape: f32[2,784], index: 0, kind: input, shape index: {}]
  %s1 = inlined_call_operand.hbm [shape: bf16[784,128], index: 1, kind: input, shape index: {}]
  %s2 = inlined_call_operand.vmem [shape: f32[1,128], index: 2, kind: input, shape index: {}]
  %s3 = inlined_call_operand.vmem [shape: bf16[128,128], index: 3, kind: input, shape index: {}]
  %s4 = inlined_call_operand.vmem [shape: f32[1,128], index: 4, kind: input, shape index: {}]
  %s5 = inlined_call_operand.vmem [shape: bf16[128,128], index: 5, kind: input, shape index: {}]
  %s6 = inlined_call_operand.vmem [shape: f32[1,128], index: 6, kind: input, shape index: {}]
  %s7 = inlined_call_operand.hbm [shape: f32[2,128], index: 7, kind: output, shape index: {}]
  %s8 = sld [smem:[#allocation0]]
  $region42: #{custom_mlp_forward.1} parent=0
    _
  %s10 = ssub.s32 1, %s8
  %s11 = scalar_select 0, %s10, %s8
  $region1: #{custom_mlp_forward.1} parent=0
    #allocation2 [shape = 'u8[200704]{0}', space=vmem, size = 0x31000, scoped, tag = 'input window, operand 1, single buffered']
    #allocation3 [shape = 's32[1]{0}', space=sflag, size = 0x4, scoped, tag = 'scoped memory for custom_mlp_forward.1']
    #allocation4 [shape = 's32[1]{0}', space=sflag, size = 0x4, scoped, tag = 'scoped memory for custom_mlp_forward.1']
    #allocation5 [shape = 'u8[4096]{0}', space=vmem, size = 0x1000, scoped, tag = 'output window, operand 0, single buffered']
    %12 = vsyncpa [#allocation3], 0
    %13 = vsyncpa [#allocation4], 0
    // Predicated region
    $region2: #{custom_mlp_forward.1} parent=1 // pred_check
      _
    $region3: #{custom_mlp_forward.1} parent=1 // pred_check_branch
      %15 = sbr.rel (0) target = $region5
    $region4: #{custom_mlp_forward.1} parent=1 // pred_region
      _
    $region5: #{custom_mlp_forward.1} parent=1 // pred_fallthru
      _
    // Predicated region
    $region6: #{custom_mlp_forward.1} parent=1 // pred_check
      _
    $region7: #{custom_mlp_forward.1} parent=1 // pred_check_branch
      %17 = sbr.rel (0) target = $region9
    $region8: #{custom_mlp_forward.1} parent=1 // pred_region
      %19 = vsyncadd [#allocation3], 0
      %s20 = sshll.u32 %s1, 4
      %s21 = int_to_ptr.hbm [resolvable:$true] %s20
      %s22 = sshll.u32 [#allocation2], 4
      %s23 = int_to_ptr.vmem [resolvable:$true] %s22
      %28 = dma.hbm_to_vmem [thread:$0]  %s21, 6272, %s23, [#allocation3], 64, 64, 4
    $region9: #{custom_mlp_forward.1} parent=1 // pred_fallthru
      _
    // Predicated region
    $region10: #{custom_mlp_forward.1} parent=1 // pred_check
      _
    $region11: #{custom_mlp_forward.1} parent=1 // pred_check_branch
      %30 = sbr.rel (0) target = $region13
    $region12: #{custom_mlp_forward.1} parent=1 // pred_region
      _
    $region13: #{custom_mlp_forward.1} parent=1 // pred_fallthru
      _
    // Predicated region
    $region14: #{custom_mlp_forward.1} parent=1 // pred_check
      _
    $region15: #{custom_mlp_forward.1} parent=1 // pred_check_branch
      %32 = sbr.rel (0) target = $region17
    $region16: #{custom_mlp_forward.1} parent=1 // pred_region
      _
    $region17: #{custom_mlp_forward.1} parent=1 // pred_fallthru
      _
    // Predicated region
    $region18: #{custom_mlp_forward.1} parent=1 // pred_check
      _
    $region19: #{custom_mlp_forward.1} parent=1 // pred_check_branch
      %34 = sbr.rel (0) target = $region21
    $region20: #{custom_mlp_forward.1} parent=1 // pred_region
      _
    $region21: #{custom_mlp_forward.1} parent=1 // pred_fallthru
      _
    // Predicated region
    $region22: #{custom_mlp_forward.1} parent=1 // pred_check
      _
    $region23: #{custom_mlp_forward.1} parent=1 // pred_check_branch
      %36 = sbr.rel (0) target = $region25
    $region24: #{custom_mlp_forward.1} parent=1 // pred_region
      _
    $region25: #{custom_mlp_forward.1} parent=1 // pred_fallthru
      _
    // Predicated region
    $region26: #{custom_mlp_forward.1} parent=1 // pred_check
      _
    $region27: #{custom_mlp_forward.1} parent=1 // pred_check_branch
      %38 = sbr.rel (0) target = $region29
    $region28: #{custom_mlp_forward.1} parent=1 // pred_region
      _
    $region29: #{custom_mlp_forward.1} parent=1 // pred_fallthru
      _
    // Predicated region
    $region30: #{custom_mlp_forward.1} parent=1 // pred_check
      _
    $region31: #{custom_mlp_forward.1} parent=1 // pred_check_branch
      %40 = sbr.rel (0) target = $region33
    $region32: #{custom_mlp_forward.1} parent=1 // pred_region
      %42 = dma.done [#allocation3], 6272
    $region33: #{custom_mlp_forward.1} parent=1 // pred_fallthru
      _
    %v44 = vld [vmem:[%s0] sm:$0xff]
    %v45 = vld [vmem:[%s0 + $0x8] sm:$0x3f]
    %v46 = vld [vmem:[%s0 + $0xe] sm:$0xff]
    %v47 = vld [vmem:[%s0 + $0x16] sm:$0x3f]
    %v48 = vld [vmem:[%s0 + $0x1c] sm:$0xff]
    %v49 = vld [vmem:[%s0 + $0x24] sm:$0x3f]
    %v50 = vld [vmem:[%s0 + $0x2a] sm:$0xff]
    %v51 = vld [vmem:[%s0 + $0x32] sm:$0x3f]
    %60 = vst [vmem:[#allocation1] ss:$4 sm:$0xff] %v44
    %s61 = scalar_lea.vmem [#allocation1], 1
    %62 = vst [vmem:[%s61] ss:$4 sm:$0xff] %v46
    %s63 = scalar_lea.vmem [#allocation1], 2
    %64 = vst [vmem:[%s63] ss:$4 sm:$0xff] %v48
    %s65 = scalar_lea.vmem [#allocation1], 3
    %66 = vst [vmem:[%s65] ss:$4 sm:$0xff] %v50
    %s67 = scalar_lea.vmem [#allocation1], 32
    %68 = vst [vmem:[%s67] ss:$4 sm:$0xff] %v45
    %s69 = scalar_lea.vmem [#allocation1], 33
    %70 = vst [vmem:[%s69] ss:$4 sm:$0xff] %v47
    %s71 = scalar_lea.vmem [#allocation1], 34
    %72 = vst [vmem:[%s71] ss:$4 sm:$0xff] %v49
    %s73 = scalar_lea.vmem [#allocation1], 35
    %74 = vst [vmem:[%s73] ss:$4 sm:$0xff] %v51
    %v75 = vld.sshfl [vmem:[#allocation1] sm:$0xff pattern:$0x73625140]
    %v76 = vld.sshfl [vmem:[#allocation1 + $0x8] sm:$0xff pattern:$0x73625140]
    %v77 = vld.sshfl [vmem:[#allocation1 + $0x10] sm:$0xff pattern:$0x73625140]
    %v78 = vld.sshfl [vmem:[#allocation1 + $0x18] sm:$0xff pattern:$0x73625140]
    %v79 = vld.sshfl [vmem:[#allocation1 + $0x20] sm:$0xff pattern:$0x73625140]
    %v80 = vld.sshfl [vmem:[#allocation1 + $0x28] sm:$0xff pattern:$0x73625140]
    %v81 = vld.sshfl [vmem:[#allocation1 + $0x30] sm:$0xff pattern:$0x73625140]
    %v89 = vpack.c.bf16 %v75, %v75
    %v90 = vpack.c.bf16 %v76, %v76
    %v91 = vpack.c.bf16 %v77, %v77
    %v92 = vpack.c.bf16 %v78, %v78
    %v93 = vpack.c.bf16 %v79, %v79
    %v94 = vpack.c.bf16 %v80, %v80
    %v95 = vpack.c.bf16 %v81, %v81
    %v96 = vld [vmem:[#allocation2] sm:$0xf]
    %v97 = vld [vmem:[#allocation2 + $0x4] sm:$0xf]
    %v98 = vld [vmem:[#allocation2 + $0x8] sm:$0xf]
    %v99 = vld [vmem:[#allocation2 + $0xc] sm:$0xf]
    %v100 = vld [vmem:[#allocation2 + $0x10] sm:$0xf]
    %v101 = vld [vmem:[#allocation2 + $0x14] sm:$0xf]
    %v102 = vld [vmem:[#allocation2 + $0x18] sm:$0xf]
    %v103 = vld [vmem:[#allocation2 + $0x1c] sm:$0xf]
    %v104 = vld [vmem:[#allocation2 + $0x20] sm:$0xf]
    %v105 = vld [vmem:[#allocation2 + $0x24] sm:$0xf]
    %v106 = vld [vmem:[#allocation2 + $0x28] sm:$0xf]
    %v107 = vld [vmem:[#allocation2 + $0x2c] sm:$0xf]
    %v108 = vld [vmem:[#allocation2 + $0x30] sm:$0xf]
    %v109 = vld [vmem:[#allocation2 + $0x34] sm:$0xf]
    %v110 = vld [vmem:[#allocation2 + $0x38] sm:$0xf]
    %v111 = vld [vmem:[#allocation2 + $0x3c] sm:$0xf]
    %v112 = vld [vmem:[#allocation2 + $0x40] sm:$0xf]
    %v113 = vld [vmem:[#allocation2 + $0x44] sm:$0xf]
    %v114 = vld [vmem:[#allocation2 + $0x48] sm:$0xf]
    %v115 = vld [vmem:[#allocation2 + $0x4c] sm:$0xf]
    %v116 = vld [vmem:[#allocation2 + $0x50] sm:$0xf]
    %v117 = vld [vmem:[#allocation2 + $0x54] sm:$0xf]
    %v118 = vld [vmem:[#allocation2 + $0x58] sm:$0xf]
    %v119 = vld [vmem:[#allocation2 + $0x5c] sm:$0xf]
    %v120 = vld [vmem:[#allocation2 + $0x60] sm:$0xf]
    %v121 = vld [vmem:[#allocation2 + $0x64] sm:$0xf]
    %v122 = vld [vmem:[#allocation2 + $0x68] sm:$0xf]
    %v123 = vld [vmem:[#allocation2 + $0x6c] sm:$0xf]
    %v124 = vld [vmem:[#allocation2 + $0x70] sm:$0xf]
    %v125 = vld [vmem:[#allocation2 + $0x74] sm:$0xf]
    %v126 = vld [vmem:[#allocation2 + $0x78] sm:$0xf]
    %v127 = vld [vmem:[#allocation2 + $0x7c] sm:$0xf]
    %v128 = vld [vmem:[#allocation2 + $0x80] sm:$0xf]
    %v129 = vld [vmem:[#allocation2 + $0x84] sm:$0xf]
    %v130 = vld [vmem:[#allocation2 + $0x88] sm:$0xf]
    %v131 = vld [vmem:[#allocation2 + $0x8c] sm:$0xf]
    %v132 = vld [vmem:[#allocation2 + $0x90] sm:$0xf]
    %v133 = vld [vmem:[#allocation2 + $0x94] sm:$0xf]
    %v134 = vld [vmem:[#allocation2 + $0x98] sm:$0xf]
    %v135 = vld [vmem:[#allocation2 + $0x9c] sm:$0xf]
    %v136 = vld [vmem:[#allocation2 + $0xa0] sm:$0xf]
    %v137 = vld [vmem:[#allocation2 + $0xa4] sm:$0xf]
    %v138 = vld [vmem:[#allocation2 + $0xa8] sm:$0xf]
    %v139 = vld [vmem:[#allocation2 + $0xac] sm:$0xf]
    %v140 = vld [vmem:[#allocation2 + $0xb0] sm:$0xf]
    %v141 = vld [vmem:[#allocation2 + $0xb4] sm:$0xf]
    %v142 = vld [vmem:[#allocation2 + $0xb8] sm:$0xf]
    %v143 = vld [vmem:[#allocation2 + $0xbc] sm:$0xf]
    %v144 = vld [vmem:[#allocation2 + $0xc0] sm:$0xf]
    %v145 = vld [vmem:[#allocation2 + $0xc4] sm:$0xf]
    %v146 = vld [vmem:[#allocation2 + $0xc8] sm:$0xf]
    %v147 = vld [vmem:[#allocation2 + $0xcc] sm:$0xf]
    %v148 = vld [vmem:[#allocation2 + $0xd0] sm:$0xf]
    %v149 = vld [vmem:[#allocation2 + $0xd4] sm:$0xf]
    %v150 = vld [vmem:[#allocation2 + $0xd8] sm:$0xf]
    %v151 = vld [vmem:[#allocation2 + $0xdc] sm:$0xf]
    %v152 = vld [vmem:[#allocation2 + $0xe0] sm:$0xf]
    %v153 = vld [vmem:[#allocation2 + $0xe4] sm:$0xf]
    %v154 = vld [vmem:[#allocation2 + $0xe8] sm:$0xf]
    %v155 = vld [vmem:[#allocation2 + $0xec] sm:$0xf]
    %v156 = vld [vmem:[#allocation2 + $0xf0] sm:$0xf]
    %v157 = vld [vmem:[#allocation2 + $0xf4] sm:$0xf]
    %v158 = vld [vmem:[#allocation2 + $0xf8] sm:$0xf]
    %v159 = vld [vmem:[#allocation2 + $0xfc] sm:$0xf]
    %v160 = vld [vmem:[#allocation2 + $0x100] sm:$0xf]
    %v161 = vld [vmem:[#allocation2 + $0x104] sm:$0xf]
    %v162 = vld [vmem:[#allocation2 + $0x108] sm:$0xf]
    %v163 = vld [vmem:[#allocation2 + $0x10c] sm:$0xf]
    %v164 = vld [vmem:[#allocation2 + $0x110] sm:$0xf]
    %v165 = vld [vmem:[#allocation2 + $0x114] sm:$0xf]
    %v166 = vld [vmem:[#allocation2 + $0x118] sm:$0xf]
    %v167 = vld [vmem:[#allocation2 + $0x11c] sm:$0xf]
    %v168 = vld [vmem:[#allocation2 + $0x120] sm:$0xf]
    %v169 = vld [vmem:[#allocation2 + $0x124] sm:$0xf]
    %v170 = vld [vmem:[#allocation2 + $0x128] sm:$0xf]
    %v171 = vld [vmem:[#allocation2 + $0x12c] sm:$0xf]
    %v172 = vld [vmem:[#allocation2 + $0x130] sm:$0xf]
    %v173 = vld [vmem:[#allocation2 + $0x134] sm:$0xf]
    %v174 = vld [vmem:[#allocation2 + $0x138] sm:$0xf]
    %v175 = vld [vmem:[#allocation2 + $0x13c] sm:$0xf]
    %v176 = vld [vmem:[#allocation2 + $0x140] sm:$0xf]
    %v177 = vld [vmem:[#allocation2 + $0x144] sm:$0xf]
    %v178 = vld [vmem:[#allocation2 + $0x148] sm:$0xf]
    %v179 = vld [vmem:[#allocation2 + $0x14c] sm:$0xf]
    %v180 = vld [vmem:[#allocation2 + $0x150] sm:$0xf]
    %v181 = vld [vmem:[#allocation2 + $0x154] sm:$0xf]
    %v182 = vld [vmem:[#allocation2 + $0x158] sm:$0xf]
    %v183 = vld [vmem:[#allocation2 + $0x15c] sm:$0xf]
    %v184 = vld [vmem:[#allocation2 + $0x160] sm:$0xf]
    %v185 = vld [vmem:[#allocation2 + $0x164] sm:$0xf]
    %v186 = vld [vmem:[#allocation2 + $0x168] sm:$0xf]
    %v187 = vld [vmem:[#allocation2 + $0x16c] sm:$0xf]
    %v188 = vld [vmem:[#allocation2 + $0x170] sm:$0xf]
    %v189 = vld [vmem:[#allocation2 + $0x174] sm:$0xf]
    %v190 = vld [vmem:[#allocation2 + $0x178] sm:$0xf]
    %v191 = vld [vmem:[#allocation2 + $0x17c] sm:$0xf]
    %v192 = vld [vmem:[#allocation2 + $0x180] sm:$0xf]
    %v193 = vld [vmem:[#allocation2 + $0x184] sm:$0xf]
    %v194 = vld [vmem:[%s2] sm:$0x1]
    %v196 = vperm.slane %v194, 0
    %v296 = vunpack.c.l.b16 %v96
    %v297 = vunpack.c.l.b16 %v97
    %v298 = vunpack.c.l.b16 %v98
    %v299 = vunpack.c.l.b16 %v99
    %v300 = vunpack.c.l.b16 %v100
    %v301 = vunpack.c.l.b16 %v101
    %v302 = vunpack.c.l.b16 %v102
    %v303 = vunpack.c.l.b16 %v103
    %v304 = vunpack.c.l.b16 %v104
    %v305 = vunpack.c.l.b16 %v105
    %v306 = vunpack.c.l.b16 %v106
    %v307 = vunpack.c.l.b16 %v107
    %v308 = vunpack.c.l.b16 %v108
    %v309 = vunpack.c.l.b16 %v109
    %v310 = vunpack.c.l.b16 %v110
    %v311 = vunpack.c.l.b16 %v111
    %v312 = vunpack.c.l.b16 %v112
    %v313 = vunpack.c.l.b16 %v113
    %v314 = vunpack.c.l.b16 %v114
    %v315 = vunpack.c.l.b16 %v115
    %v316 = vunpack.c.l.b16 %v116
    %v317 = vunpack.c.l.b16 %v117
    %v318 = vunpack.c.l.b16 %v118
    %v319 = vunpack.c.l.b16 %v119
    %v320 = vunpack.c.l.b16 %v120
    %v321 = vunpack.c.l.b16 %v121
    %v322 = vunpack.c.l.b16 %v122
    %v323 = vunpack.c.l.b16 %v123
    %v324 = vunpack.c.l.b16 %v124
    %v325 = vunpack.c.l.b16 %v125
    %v326 = vunpack.c.l.b16 %v126
    %v327 = vunpack.c.l.b16 %v127
    %v328 = vunpack.c.l.b16 %v128
    %v329 = vunpack.c.l.b16 %v129
    %v330 = vunpack.c.l.b16 %v130
    %v331 = vunpack.c.l.b16 %v131
    %v332 = vunpack.c.l.b16 %v132
    %v333 = vunpack.c.l.b16 %v133
    %v334 = vunpack.c.l.b16 %v134
    %v335 = vunpack.c.l.b16 %v135
    %v336 = vunpack.c.l.b16 %v136
    %v337 = vunpack.c.l.b16 %v137
    %v338 = vunpack.c.l.b16 %v138
    %v339 = vunpack.c.l.b16 %v139
    %v340 = vunpack.c.l.b16 %v140
    %v341 = vunpack.c.l.b16 %v141
    %v342 = vunpack.c.l.b16 %v142
    %v343 = vunpack.c.l.b16 %v143
    %v344 = vunpack.c.l.b16 %v144
    %v345 = vunpack.c.l.b16 %v145
    %v346 = vunpack.c.l.b16 %v146
    %v347 = vunpack.c.l.b16 %v147
    %v348 = vunpack.c.l.b16 %v148
    %v349 = vunpack.c.l.b16 %v149
    %v350 = vunpack.c.l.b16 %v150
    %v351 = vunpack.c.l.b16 %v151
    %v352 = vunpack.c.l.b16 %v152
    %v353 = vunpack.c.l.b16 %v153
    %v354 = vunpack.c.l.b16 %v154
    %v355 = vunpack.c.l.b16 %v155
    %v356 = vunpack.c.l.b16 %v156
    %v357 = vunpack.c.l.b16 %v157
    %v358 = vunpack.c.l.b16 %v158
    %v359 = vunpack.c.l.b16 %v159
    %v360 = vunpack.c.l.b16 %v160
    %v361 = vunpack.c.l.b16 %v161
    %v362 = vunpack.c.l.b16 %v162
    %v363 = vunpack.c.l.b16 %v163
    %v364 = vunpack.c.l.b16 %v164
    %v365 = vunpack.c.l.b16 %v165
    %v366 = vunpack.c.l.b16 %v166
    %v367 = vunpack.c.l.b16 %v167
    %v368 = vunpack.c.l.b16 %v168
    %v369 = vunpack.c.l.b16 %v169
    %v370 = vunpack.c.l.b16 %v170
    %v371 = vunpack.c.l.b16 %v171
    %v372 = vunpack.c.l.b16 %v172
    %v373 = vunpack.c.l.b16 %v173
    %v374 = vunpack.c.l.b16 %v174
    %v375 = vunpack.c.l.b16 %v175
    %v376 = vunpack.c.l.b16 %v176
    %v377 = vunpack.c.l.b16 %v177
    %v378 = vunpack.c.l.b16 %v178
    %v379 = vunpack.c.l.b16 %v179
    %v380 = vunpack.c.l.b16 %v180
    %v381 = vunpack.c.l.b16 %v181
    %v382 = vunpack.c.l.b16 %v182
    %v383 = vunpack.c.l.b16 %v183
    %v384 = vunpack.c.l.b16 %v184
    %v385 = vunpack.c.l.b16 %v185
    %v386 = vunpack.c.l.b16 %v186
    %v387 = vunpack.c.l.b16 %v187
    %v388 = vunpack.c.l.b16 %v188
    %v389 = vunpack.c.l.b16 %v189
    %v390 = vunpack.c.l.b16 %v190
    %v391 = vunpack.c.l.b16 %v191
    %v392 = vunpack.c.l.b16 %v192
    %v393 = vunpack.c.l.b16 %v193
    %v394 = vpack.c.b16 %v297, %v296
    %v395 = vpack.c.b16 %v299, %v298
    %v396 = vpack.c.b16 %v301, %v300
    %v397 = vpack.c.b16 %v303, %v302
    %v398 = vpack.c.b16 %v305, %v304
    %v399 = vpack.c.b16 %v307, %v306
    %v400 = vpack.c.b16 %v309, %v308
    %v401 = vpack.c.b16 %v311, %v310
    %v402 = vpack.c.b16 %v313, %v312
    %v403 = vpack.c.b16 %v315, %v314
    %v404 = vpack.c.b16 %v317, %v316
    %v405 = vpack.c.b16 %v319, %v318
    %v406 = vpack.c.b16 %v321, %v320
    %v407 = vpack.c.b16 %v323, %v322
    %v408 = vpack.c.b16 %v325, %v324
    %v409 = vpack.c.b16 %v327, %v326
    %v410 = vpack.c.b16 %v329, %v328
    %v411 = vpack.c.b16 %v331, %v330
    %v412 = vpack.c.b16 %v333, %v332
    %v413 = vpack.c.b16 %v335, %v334
    %v414 = vpack.c.b16 %v337, %v336
    %v415 = vpack.c.b16 %v339, %v338
    %v416 = vpack.c.b16 %v341, %v340
    %v417 = vpack.c.b16 %v343, %v342
    %v418 = vpack.c.b16 %v345, %v344
    %v419 = vpack.c.b16 %v347, %v346
    %v420 = vpack.c.b16 %v349, %v348
    %v421 = vpack.c.b16 %v351, %v350
    %v422 = vpack.c.b16 %v353, %v352
    %v423 = vpack.c.b16 %v355, %v354
    %v424 = vpack.c.b16 %v357, %v356
    %v425 = vpack.c.b16 %v359, %v358
    %v426 = vpack.c.b16 %v361, %v360
    %v427 = vpack.c.b16 %v363, %v362
    %v428 = vpack.c.b16 %v365, %v364
    %v429 = vpack.c.b16 %v367, %v366
    %v430 = vpack.c.b16 %v369, %v368
    %v431 = vpack.c.b16 %v371, %v370
    %v432 = vpack.c.b16 %v373, %v372
    %v433 = vpack.c.b16 %v375, %v374
    %v434 = vpack.c.b16 %v377, %v376
    %v435 = vpack.c.b16 %v379, %v378
    %v436 = vpack.c.b16 %v381, %v380
    %v437 = vpack.c.b16 %v383, %v382
    %v438 = vpack.c.b16 %v385, %v384
    %v439 = vpack.c.b16 %v387, %v386
    %v440 = vpack.c.b16 %v389, %v388
    %v441 = vpack.c.b16 %v391, %v390
    %v442 = vpack.c.b16 %v393, %v392
    %vm492 = vcmask 130048
    %v494 = vsel %vm492, %v95, 0
    %496 = vmatpush.bf16.msra.mxu0 %v401
    %497 = vmatpush.bf16.msra.mxu0 %v400
    %498 = vmatpush.bf16.msra.mxu0 %v399
    %499 = vmatpush.bf16.msra.mxu0 %v398
    %500 = vmatpush.bf16.msra.mxu0 %v397
    %501 = vmatpush.bf16.msra.mxu0 %v396
    %502 = vmatpush.bf16.msra.mxu0 %v395
    %503 = vmatpush.bf16.msra.mxu0 %v394
    %504 = vmatmul.bf16.gmra.mxu0 %v89
    %v505 = vpop.f32.mrf.mxu0
    %v506 = vadd.f32 %v196, %v505
    %v507 = vpop.f32.mrf.mxu0
    %508 = vdwg.mxu0
    %509 = vmatpush.bf16.msra.mxu0 %v409
    %510 = vmatpush.bf16.msra.mxu0 %v408
    %511 = vmatpush.bf16.msra.mxu0 %v407
    %512 = vmatpush.bf16.msra.mxu0 %v406
    %513 = vmatpush.bf16.msra.mxu0 %v405
    %514 = vmatpush.bf16.msra.mxu0 %v404
    %515 = vmatpush.bf16.msra.mxu0 %v403
    %516 = vmatpush.bf16.msra.mxu0 %v402
    %517 = vmatmul.bf16.gmra.mxu0 %v90
    %v518 = vpop.f32.mrf.mxu0
    %v519 = vadd.f32 %v506, %v518
    %v520 = vpop.f32.mrf.mxu0
    %521 = vdwg.mxu0
    %522 = vmatpush.bf16.msra.mxu0 %v417
    %523 = vmatpush.bf16.msra.mxu0 %v416
    %524 = vmatpush.bf16.msra.mxu0 %v415
    %525 = vmatpush.bf16.msra.mxu0 %v414
    %526 = vmatpush.bf16.msra.mxu0 %v413
    %527 = vmatpush.bf16.msra.mxu0 %v412
    %528 = vmatpush.bf16.msra.mxu0 %v411
    %529 = vmatpush.bf16.msra.mxu0 %v410
    %530 = vmatmul.bf16.gmra.mxu0 %v91
    %v531 = vpop.f32.mrf.mxu0
    %v532 = vadd.f32 %v519, %v531
    %v533 = vpop.f32.mrf.mxu0
    %534 = vdwg.mxu0
    %535 = vmatpush.bf16.msra.mxu0 %v425
    %536 = vmatpush.bf16.msra.mxu0 %v424
    %537 = vmatpush.bf16.msra.mxu0 %v423
    %538 = vmatpush.bf16.msra.mxu0 %v422
    %539 = vmatpush.bf16.msra.mxu0 %v421
    %540 = vmatpush.bf16.msra.mxu0 %v420
    %541 = vmatpush.bf16.msra.mxu0 %v419
    %542 = vmatpush.bf16.msra.mxu0 %v418
    %543 = vmatmul.bf16.gmra.mxu0 %v92
    %v544 = vpop.f32.mrf.mxu0
    %v545 = vadd.f32 %v532, %v544
    %v546 = vpop.f32.mrf.mxu0
    %547 = vdwg.mxu0
    %548 = vmatpush.bf16.msra.mxu0 %v433
    %549 = vmatpush.bf16.msra.mxu0 %v432
    %550 = vmatpush.bf16.msra.mxu0 %v431
    %551 = vmatpush.bf16.msra.mxu0 %v430
    %552 = vmatpush.bf16.msra.mxu0 %v429
    %553 = vmatpush.bf16.msra.mxu0 %v428
    %554 = vmatpush.bf16.msra.mxu0 %v427
    %555 = vmatpush.bf16.msra.mxu0 %v426
    %556 = vmatmul.bf16.gmra.mxu0 %v93
    %v557 = vpop.f32.mrf.mxu0
    %v558 = vadd.f32 %v545, %v557
    %v559 = vpop.f32.mrf.mxu0
    %560 = vdwg.mxu0
    %561 = vmatpush.bf16.msra.mxu0 %v441
    %562 = vmatpush.bf16.msra.mxu0 %v440
    %563 = vmatpush.bf16.msra.mxu0 %v439
    %564 = vmatpush.bf16.msra.mxu0 %v438
    %565 = vmatpush.bf16.msra.mxu0 %v437
    %566 = vmatpush.bf16.msra.mxu0 %v436
    %567 = vmatpush.bf16.msra.mxu0 %v435
    %568 = vmatpush.bf16.msra.mxu0 %v434
    %569 = vmatmul.bf16.gmra.mxu0 %v94
    %v570 = vpop.f32.mrf.mxu0
    %v571 = vadd.f32 %v558, %v570
    %v572 = vpop.f32.mrf.mxu0
    %573 = vdwg.mxu0
    %574 = vmatpush.bf16.msra.mxu0 0
    %575 = vmatpush.bf16.msra.mxu0 0
    %576 = vmatpush.bf16.msra.mxu0 0
    %577 = vmatpush.bf16.msra.mxu0 0
    %578 = vmatpush.bf16.msra.mxu0 0
    %579 = vmatpush.bf16.msra.mxu0 0
    %580 = vmatpush.bf16.msra.mxu0 0
    %581 = vmatpush.bf16.msra.mxu0 %v442
    %582 = vmatmul.bf16.gmra.mxu0 %v494
    %v583 = vpop.f32.mrf.mxu0
    %v584 = vadd.f32 %v571, %v583
    %v585 = vpop.f32.mrf.mxu0
    %586 = vdwg.mxu0
    %v587 = vmax.f32 %v584, 0.0
    %v588 = vpack.c.bf16 %v587, %v587
    %v589 = vld [vmem:[%s3] sm:$0xf]
    %v590 = vld [vmem:[%s3 + $0x4] sm:$0xf]
    %v591 = vld [vmem:[%s3 + $0x8] sm:$0xf]
    %v592 = vld [vmem:[%s3 + $0xc] sm:$0xf]
    %v593 = vld [vmem:[%s3 + $0x10] sm:$0xf]
    %v594 = vld [vmem:[%s3 + $0x14] sm:$0xf]
    %v595 = vld [vmem:[%s3 + $0x18] sm:$0xf]
    %v596 = vld [vmem:[%s3 + $0x1c] sm:$0xf]
    %v597 = vld [vmem:[%s3 + $0x20] sm:$0xf]
    %v598 = vld [vmem:[%s3 + $0x24] sm:$0xf]
    %v599 = vld [vmem:[%s3 + $0x28] sm:$0xf]
    %v600 = vld [vmem:[%s3 + $0x2c] sm:$0xf]
    %v601 = vld [vmem:[%s3 + $0x30] sm:$0xf]
    %v602 = vld [vmem:[%s3 + $0x34] sm:$0xf]
    %v603 = vld [vmem:[%s3 + $0x38] sm:$0xf]
    %v604 = vld [vmem:[%s3 + $0x3c] sm:$0xf]
    %v605 = vld [vmem:[%s4] sm:$0x1]
    %v607 = vperm.slane %v605, 0
    %v625 = vunpack.c.l.b16 %v589
    %v626 = vunpack.c.l.b16 %v590
    %v627 = vunpack.c.l.b16 %v591
    %v628 = vunpack.c.l.b16 %v592
    %v629 = vunpack.c.l.b16 %v593
    %v630 = vunpack.c.l.b16 %v594
    %v631 = vunpack.c.l.b16 %v595
    %v632 = vunpack.c.l.b16 %v596
    %v633 = vunpack.c.l.b16 %v597
    %v634 = vunpack.c.l.b16 %v598
    %v635 = vunpack.c.l.b16 %v599
    %v636 = vunpack.c.l.b16 %v600
    %v637 = vunpack.c.l.b16 %v601
    %v638 = vunpack.c.l.b16 %v602
    %v639 = vunpack.c.l.b16 %v603
    %v640 = vunpack.c.l.b16 %v604
    %v641 = vpack.c.b16 %v626, %v625
    %v642 = vpack.c.b16 %v628, %v627
    %v643 = vpack.c.b16 %v630, %v629
    %v644 = vpack.c.b16 %v632, %v631
    %v645 = vpack.c.b16 %v634, %v633
    %v646 = vpack.c.b16 %v636, %v635
    %v647 = vpack.c.b16 %v638, %v637
    %v648 = vpack.c.b16 %v640, %v639
    %657 = vmatpush.bf16.msra.mxu0 %v648
    %658 = vmatpush.bf16.msra.mxu0 %v647
    %659 = vmatpush.bf16.msra.mxu0 %v646
    %660 = vmatpush.bf16.msra.mxu0 %v645
    %661 = vmatpush.bf16.msra.mxu0 %v644
    %662 = vmatpush.bf16.msra.mxu0 %v643
    %663 = vmatpush.bf16.msra.mxu0 %v642
    %664 = vmatpush.bf16.msra.mxu0 %v641
    %665 = vmatmul.bf16.gmra.mxu0 %v588
    %v666 = vpop.f32.mrf.mxu0
    %v667 = vadd.f32 %v607, %v666
    %v668 = vpop.f32.mrf.mxu0
    %669 = vdwg.mxu0
    %v670 = vmax.f32 %v667, 0.0
    %v671 = vpack.c.bf16 %v670, %v670
    %v672 = vld [vmem:[%s5] sm:$0xf]
    %v673 = vld [vmem:[%s5 + $0x4] sm:$0xf]
    %v674 = vld [vmem:[%s5 + $0x8] sm:$0xf]
    %v675 = vld [vmem:[%s5 + $0xc] sm:$0xf]
    %v676 = vld [vmem:[%s5 + $0x10] sm:$0xf]
    %v677 = vld [vmem:[%s5 + $0x14] sm:$0xf]
    %v678 = vld [vmem:[%s5 + $0x18] sm:$0xf]
    %v679 = vld [vmem:[%s5 + $0x1c] sm:$0xf]
    %v680 = vld [vmem:[%s5 + $0x20] sm:$0xf]
    %v681 = vld [vmem:[%s5 + $0x24] sm:$0xf]
    %v682 = vld [vmem:[%s5 + $0x28] sm:$0xf]
    %v683 = vld [vmem:[%s5 + $0x2c] sm:$0xf]
    %v684 = vld [vmem:[%s5 + $0x30] sm:$0xf]
    %v685 = vld [vmem:[%s5 + $0x34] sm:$0xf]
    %v686 = vld [vmem:[%s5 + $0x38] sm:$0xf]
    %v687 = vld [vmem:[%s5 + $0x3c] sm:$0xf]
    %v688 = vld [vmem:[%s6] sm:$0x1]
    %v690 = vperm.slane %v688, 0
    %v708 = vunpack.c.l.b16 %v672
    %v709 = vunpack.c.l.b16 %v673
    %v710 = vunpack.c.l.b16 %v674
    %v711 = vunpack.c.l.b16 %v675
    %v712 = vunpack.c.l.b16 %v676
    %v713 = vunpack.c.l.b16 %v677
    %v714 = vunpack.c.l.b16 %v678
    %v715 = vunpack.c.l.b16 %v679
    %v716 = vunpack.c.l.b16 %v680
    %v717 = vunpack.c.l.b16 %v681
    %v718 = vunpack.c.l.b16 %v682
    %v719 = vunpack.c.l.b16 %v683
    %v720 = vunpack.c.l.b16 %v684
    %v721 = vunpack.c.l.b16 %v685
    %v722 = vunpack.c.l.b16 %v686
    %v723 = vunpack.c.l.b16 %v687
    %v724 = vpack.c.b16 %v709, %v708
    %v725 = vpack.c.b16 %v711, %v710
    %v726 = vpack.c.b16 %v713, %v712
    %v727 = vpack.c.b16 %v715, %v714
    %v728 = vpack.c.b16 %v717, %v716
    %v729 = vpack.c.b16 %v719, %v718
    %v730 = vpack.c.b16 %v721, %v720
    %v731 = vpack.c.b16 %v723, %v722
    %740 = vmatpush.bf16.msra.mxu0 %v731
    %741 = vmatpush.bf16.msra.mxu0 %v730
    %742 = vmatpush.bf16.msra.mxu0 %v729
    %743 = vmatpush.bf16.msra.mxu0 %v728
    %744 = vmatpush.bf16.msra.mxu0 %v727
    %745 = vmatpush.bf16.msra.mxu0 %v726
    %746 = vmatpush.bf16.msra.mxu0 %v725
    %747 = vmatpush.bf16.msra.mxu0 %v724
    %748 = vmatmul.bf16.gmra.mxu0 %v671
    %v749 = vpop.f32.mrf.mxu0
    %v750 = vadd.f32 %v690, %v749
    %v751 = vpop.f32.mrf.mxu0
    %752 = vdwg.mxu0
    %753 = vst [vmem:[#allocation5] sm:$0xff] %v750
    // Predicated region
    $region34: #{custom_mlp_forward.1} parent=1 // pred_check
      _
    $region35: #{custom_mlp_forward.1} parent=1 // pred_check_branch
      %755 = sbr.rel (0) target = $region37
    $region36: #{custom_mlp_forward.1} parent=1 // pred_region
      %757 = vsyncadd [#allocation4], 96
      %s758 = sshll.u32 [#allocation5], 4
      %s759 = int_to_ptr.vmem [resolvable:$true] %s758
      %s760 = sshll.u32 %s7, 4
      %s761 = int_to_ptr.hbm [resolvable:$true] %s760
      %766 = dma.vmem_to_hbm [thread:$0]  %s759, 32, %s761, [#allocation4], 32, 32, 2
    $region37: #{custom_mlp_forward.1} parent=1 // pred_fallthru
      _
    // Predicated region
    $region38: #{custom_mlp_forward.1} parent=1 // pred_check
      _
    $region39: #{custom_mlp_forward.1} parent=1 // pred_check_branch
      %768 = sbr.rel (0) target = $region41
    $region40: #{custom_mlp_forward.1} parent=1 // pred_region
      %770 = dma.done [#allocation4], 128
    $region41: #{custom_mlp_forward.1} parent=1 // pred_fallthru
      _
    %771 = vsyncpa [#allocation3], 1
    %772 = vsyncpa [#allocation4], 1

</llo_original>
